<compile_context>
chip_gen: v7x
topology: tpu7x:2x2x1
jax: 0.10.0
libtpu: 0.0.40
codegen_flags: <defaults>
</compile_context>

<pallas_src>
import math

import jax
import jax.numpy as jnp
from jax.experimental import pallas as pl
from jax.experimental.pallas import tpu as pltpu


_SQRT_2_OVER_PI = math.sqrt(2.0 / math.pi)


def _gelu_tanh(x):
    # gelu_pytorch_tanh: 0.5 * x * (1 + tanh(sqrt(2/pi) * (x + 0.044715 x^3)))
    return 0.5 * x * (1.0 + jnp.tanh(_SQRT_2_OVER_PI * (x + 0.044715 * x * x * x)))


def gemma_mlp_kernel(x_ref, wg_ref, wu_ref, wd_ref, o_ref, acc_ref):
    # x_ref   : [tm, H]       token tile
    # wg_ref  : [H, ti]       gate-proj weight tile
    # wu_ref  : [H, ti]       up-proj weight tile
    # wd_ref  : [ti, H]       down-proj weight tile
    # o_ref   : [tm, H]       output tile (written only at the last k step)
    # acc_ref : [tm, H] f32   down-proj accumulator (VMEM scratch)
    k = pl.program_id(1)

    @pl.when(k == 0)
    def _init():
        acc_ref[...] = jnp.zeros_like(acc_ref)

    x = x_ref[...]
    # Two ti-wide MXU passes (kept separate so the fp32 live set is ~half of a
    # merged [tm, 2*ti] intermediate; the EUP tanh of the gate half overlaps
    # the up-projection matmul).
    g = jnp.dot(x, wg_ref[...], preferred_element_type=jnp.float32)   # [tm, ti]
    h = _gelu_tanh(g)
    u = jnp.dot(x, wu_ref[...], preferred_element_type=jnp.float32)   # [tm, ti]
    h = h * u                                                         # GeluAndMul('tanh')
    acc_ref[...] += jnp.dot(h.astype(wd_ref.dtype), wd_ref[...],
                            preferred_element_type=jnp.float32)

    @pl.when(k == pl.num_programs(1) - 1)
    def _finalize():
        o_ref[...] = acc_ref[...].astype(o_ref.dtype)


def _tpu_profile():
    """Return (vmem_capacity_bytes, max_prefill_tm, prefill_weight_buffers)."""
    vmem = None
    try:
        vmem = int(pltpu.get_tpu_info().vmem_capacity_bytes)
    except Exception:
        vmem = None
    kind = ""
    try:
        kind = jax.devices()[0].device_kind.lower()
    except Exception:
        pass
    if vmem is None:
        vmem = (128 << 20) if ("v5" in kind or "v6" in kind) else (64 << 20)
    if "v5" in kind:
        # v5e roofline crossover ~240 flop/byte -> tm=256 is already MXU-bound;
        # spend VMEM on deeper weight buffering instead of bigger token tiles.
        return vmem, 256, 3
    if vmem <= (80 << 20):
        # v7x-class: 64 MiB VMEM, ~3.2 TB/s HBM -> tm=512 is compute-bound;
        # double-buffered weights leave VMEM for the bigger token tile.
        return vmem, 512, 2
    # v6e-class: 128 MiB VMEM, crossover ~650 flop/byte -> tm up to 1024.
    return vmem, 1024, 3


def _ti_candidates(I, max_ti):
    cands = [t for t in range(128, min(I, max_ti) + 1, 128) if I % t == 0]
    if not cands:
        cands = [I]                 # small / odd I: take the full extent
    return sorted(cands, reverse=True)


def gemma_mlp(x, w_gate, w_up, w_down, *, tm=None, ti=None, vmem_limit_bytes=None):
    T, H = x.shape
    I = w_gate.shape[1]
    assert w_gate.shape == (H, I) and w_up.shape == (H, I) and w_down.shape == (I, H)

    vmem_cap, max_prefill_tm, prefill_wbuf = _tpu_profile()
    budget = max(vmem_cap - (8 << 20), 16 << 20)
    xb = jnp.dtype(x.dtype).itemsize
    wb = jnp.dtype(w_gate.dtype).itemsize
    sub = 16 if xb == 2 else 8

    is_decode = T <= 64
    wbuf = 2 if is_decode else prefill_wbuf

    def footprint(tm_, ti_):
        return (2 * tm_ * H * xb            # x tiles (double buffered)
                + 2 * tm_ * H * xb          # out tiles
                + wbuf * H * ti_ * wb       # gate weight tiles
                + wbuf * H * ti_ * wb       # up weight tiles
                + wbuf * ti_ * H * wb       # down weight tiles
                + tm_ * H * 4)              # fp32 accumulator scratch

    # --- token tile --------------------------------------------------------
    if tm is not None:
        tm_cands = [tm]
    elif is_decode:
        tm_cands = [T]
    else:
        tm_cands = [c for c in (1024, 512, 256, 128, 64, 32, 16)
                    if c <= max_prefill_tm and T % c == 0 and c % sub == 0]
        if not tm_cands:
            tm_cands = [T]          # full extent is always layout-legal

    # --- intermediate tile --------------------------------------------------
    if ti is not None:
        ti_cands = [ti]
    else:
        if is_decode:
            # decode is pure weight streaming: bigger tiles amortize the
            # per-grid-step pipeline overhead (~0.35 us/step).
            ti_target = 2048 if vmem_cap > (96 << 20) else 1024
        else:
            ti_target = 512
        ti_cands = _ti_candidates(I, ti_target)

    chosen = None
    for tm_c in tm_cands:
        for ti_c in ti_cands:
            if footprint(tm_c, ti_c) <= budget:
                chosen = (tm_c, ti_c)
                break
        if chosen is not None:
            break
    if chosen is None:              # best effort: smallest candidate pair
        chosen = (tm_cands[-1], ti_cands[-1])
    tm, ti = chosen

    assert T % tm == 0 and I % ti == 0
    assert tm == T or tm % sub == 0, "token tile must respect sublane tiling"
    assert ti == I or ti % 128 == 0, "intermediate tile must be lane-aligned"
    n_k = I // ti
    if n_k < 3:
        wbuf = 2

    need = footprint(tm, ti)
    if vmem_limit_bytes is None:
        vmem_limit_bytes = min(max(int(need * 1.25), 32 << 20),
                               vmem_cap - (4 << 20))

    def wspec(shape, index_map):
        if wbuf >= 3:
            return pl.BlockSpec(shape, index_map, pipeline_mode=pl.Buffered(wbuf))
        return pl.BlockSpec(shape, index_map)

    # TODO(synk): v7x decode could split the I reduction across both
    # TensorCores (CORE_PARALLEL partial sums + tiny epilogue); this kernel
    # keeps a single-core reduction.
    return pl.pallas_call(
        gemma_mlp_kernel,
        out_shape=jax.ShapeDtypeStruct((T, H), x.dtype),
        grid_spec=pltpu.PrefetchScalarGridSpec(
            num_scalar_prefetch=0,
            grid=(T // tm, I // ti),
            in_specs=[
                pl.BlockSpec((tm, H), lambda i, k: (i, 0)),   # x tile over tokens
                wspec((H, ti), lambda i, k: (0, k)),          # gate weights over I
                wspec((H, ti), lambda i, k: (0, k)),          # up weights over I
                wspec((ti, H), lambda i, k: (k, 0)),          # down weights over I
            ],
            out_specs=pl.BlockSpec((tm, H), lambda i, k: (i, 0)),
            scratch_shapes=[pltpu.VMEM((tm, H), jnp.float32)],
        ),
        compiler_params=pltpu.CompilerParams(
            dimension_semantics=("parallel", "arbitrary"),
            vmem_limit_bytes=int(vmem_limit_bytes),
        ),
    )(x, w_gate, w_up, w_down)


def gemma_mlp_ref(x, w_gate, w_up, w_down):
    # Same mixed-precision semantics as the kernel: bf16 matmul operands,
    # fp32 accumulation, activation in fp32, h cast back to weight dtype.
    gate = jnp.dot(x, w_gate, preferred_element_type=jnp.float32)
    up = jnp.dot(x, w_up, preferred_element_type=jnp.float32)
    h = (_gelu_tanh(gate) * up).astype(w_down.dtype)
    return jnp.dot(h, w_down, preferred_element_type=jnp.float32).astype(x.dtype)


if __name__ == "__main__":
    # Small shapes consistent with the module: seq=16, hidden=32, intermediate=64.
    T, H, I = 16, 32, 64
    key = jax.random.PRNGKey(0)
    kx, kg, ku, kd = jax.random.split(key, 4)

    scale_in = 1.0 / math.sqrt(H)
    scale_mid = 1.0 / math.sqrt(I)
    # bf16 activations/weights (MXU-native); fp32 accumulation inside the kernel.
    x = jax.random.normal(kx, (T, H), dtype=jnp.float32).astype(jnp.bfloat16)
    w_gate = (jax.random.normal(kg, (H, I), dtype=jnp.float32) * scale_in).astype(jnp.bfloat16)
    w_up = (jax.random.normal(ku, (H, I), dtype=jnp.float32) * scale_in).astype(jnp.bfloat16)
    w_down = (jax.random.normal(kd, (I, H), dtype=jnp.float32) * scale_mid).astype(jnp.bfloat16)

    out = jax.block_until_ready(gemma_mlp(x, w_gate, w_up, w_down))

    ref = gemma_mlp_ref(x, w_gate, w_up, w_down)
    assert out.shape == (T, H)
    err = jnp.max(jnp.abs(out.astype(jnp.float32) - ref.astype(jnp.float32)))
    assert jnp.allclose(out.astype(jnp.float32), ref.astype(jnp.float32),
                        atol=3e-2, rtol=3e-2), f"max err {err}"

    # TODO(synk): tensor-parallel sharding of MergedColumnParallelLinear /
    # RowParallelLinear (and quant_config) is outside this single-device kernel.
    print("KERNEL_OK")
</pallas_src>

<mosaic_0001>
module attributes {stable_mosaic.version = 11 : i64} {
  func.func @gemma_mlp_kernel(%arg0: i32, %arg1: i32, %arg2: memref<16x32xbf16, #tpu.memory_space<vmem>>, %arg3: memref<32x64xbf16, #tpu.memory_space<vmem>>, %arg4: memref<32x64xbf16, #tpu.memory_space<vmem>>, %arg5: memref<64x32xbf16, #tpu.memory_space<vmem>>, %arg6: memref<16x32xbf16, #tpu.memory_space<vmem>>, %arg7: memref<16x32xf32, #tpu.memory_space<vmem>>) attributes {dimension_semantics = [#tpu.dimension_semantics<parallel>, #tpu.dimension_semantics<arbitrary>], iteration_bounds = array<i64: 1, 1>, scalar_prefetch = 0 : i64, scratch_operands = 1 : i64, tpu.core_type = #tpu.core_type<tc>, window_params = [{transform_indices = @transform_0, window_bounds = array<i64: 16, 32>}, {transform_indices = @transform_1, window_bounds = array<i64: 32, 64>}, {transform_indices = @transform_2, window_bounds = array<i64: 32, 64>}, {transform_indices = @transform_3, window_bounds = array<i64: 64, 32>}, {transform_indices = @transform_4, window_bounds = array<i64: 16, 32>}]} {
    %c0_i32 = arith.constant 0 : i32
    %0 = arith.cmpi eq, %arg1, %c0_i32 : i32
    %1 = arith.extui %0 : i1 to i32
    %c0_i32_0 = arith.constant 0 : i32
    %2 = arith.cmpi ne, %1, %c0_i32_0 : i32
    scf.if %2 {
      %cst_20 = arith.constant 0.000000e+00 : f32
      %31 = vector.broadcast %cst_20 : f32 to vector<16x32xf32>
      %c0_21 = arith.constant 0 : index
      %c0_22 = arith.constant 0 : index
      %32 = vector.load %arg7[%c0_21, %c0_22] : memref<16x32xf32, #tpu.memory_space<vmem>>, vector<16x32xf32>
      tpu.vector_store %arg7[%c0_21, %c0_22], %31 {strides = array<i32>} : memref<16x32xf32, #tpu.memory_space<vmem>>, vector<16x32xf32>,
    } else {
    }
    %c0 = arith.constant 0 : index
    %c0_1 = arith.constant 0 : index
    %3 = vector.load %arg2[%c0, %c0_1] : memref<16x32xbf16, #tpu.memory_space<vmem>>, vector<16x32xbf16>
    %c0_2 = arith.constant 0 : index
    %c0_3 = arith.constant 0 : index
    %4 = vector.load %arg3[%c0_2, %c0_3] : memref<32x64xbf16, #tpu.memory_space<vmem>>, vector<32x64xbf16>
    %cst = arith.constant dense<0.000000e+00> : vector<16x64xf32>
    %5 = tpu.matmul %3, %4, %cst {dimension_numbers = #tpu.dot_dimension_numbers<[1], [0], [0], [1], [0, 0, 1, 1], [], []>} : vector<16x32xbf16>, vector<32x64xbf16>, vector<16x64xf32> -> vector<16x64xf32>
    %cst_4 = arith.constant 5.000000e-01 : f32
    %6 = vector.broadcast %cst_4 : f32 to vector<16x64xf32>
    %7 = arith.mulf %6, %5 : vector<16x64xf32>
    %cst_5 = arith.constant 4.471500e-02 : f32
    %8 = vector.broadcast %cst_5 : f32 to vector<16x64xf32>
    %9 = arith.mulf %8, %5 : vector<16x64xf32>
    %10 = arith.mulf %9, %5 : vector<16x64xf32>
    %11 = arith.mulf %10, %5 : vector<16x64xf32>
    %12 = arith.addf %5, %11 : vector<16x64xf32>
    %cst_6 = arith.constant 0.797884583 : f32
    %13 = vector.broadcast %cst_6 : f32 to vector<16x64xf32>
    %14 = arith.mulf %13, %12 : vector<16x64xf32>
    %15 = math.tanh %14 : vector<16x64xf32>
    %cst_7 = arith.constant 1.000000e+00 : f32
    %16 = vector.broadcast %cst_7 : f32 to vector<16x64xf32>
    %17 = arith.addf %16, %15 : vector<16x64xf32>
    %18 = arith.mulf %7, %17 : vector<16x64xf32>
    %c0_8 = arith.constant 0 : index
    %c0_9 = arith.constant 0 : index
    %19 = vector.load %arg4[%c0_8, %c0_9] : memref<32x64xbf16, #tpu.memory_space<vmem>>, vector<32x64xbf16>
    %cst_10 = arith.constant dense<0.000000e+00> : vector<16x64xf32>
    %20 = tpu.matmul %3, %19, %cst_10 {dimension_numbers = #tpu.dot_dimension_numbers<[1], [0], [0], [1], [0, 0, 1, 1], [], []>} : vector<16x32xbf16>, vector<32x64xbf16>, vector<16x64xf32> -> vector<16x64xf32>
    %21 = arith.mulf %18, %20 : vector<16x64xf32>
    %c0_11 = arith.constant 0 : index
    %c0_12 = arith.constant 0 : index
    %22 = vector.load %arg7[%c0_11, %c0_12] : memref<16x32xf32, #tpu.memory_space<vmem>>, vector<16x32xf32>
    %23 = arith.truncf %21 : vector<16x64xf32> to vector<16x64xbf16>
    %c0_13 = arith.constant 0 : index
    %c0_14 = arith.constant 0 : index
    %24 = vector.load %arg5[%c0_13, %c0_14] : memref<64x32xbf16, #tpu.memory_space<vmem>>, vector<64x32xbf16>
    %cst_15 = arith.constant dense<0.000000e+00> : vector<16x32xf32>
    %25 = tpu.matmul %23, %24, %cst_15 {dimension_numbers = #tpu.dot_dimension_numbers<[1], [0], [0], [1], [0, 0, 1, 1], [], []>} : vector<16x64xbf16>, vector<64x32xbf16>, vector<16x32xf32> -> vector<16x32xf32>
    %26 = arith.addf %22, %25 : vector<16x32xf32>
    %c0_16 = arith.constant 0 : index
    %c0_17 = arith.constant 0 : index
    %27 = vector.load %arg7[%c0_16, %c0_17] : memref<16x32xf32, #tpu.memory_space<vmem>>, vector<16x32xf32>
    tpu.vector_store %arg7[%c0_16, %c0_17], %26 {strides = array<i32>} : memref<16x32xf32, #tpu.memory_space<vmem>>, vector<16x32xf32>,
    %c0_i32_18 = arith.constant 0 : i32
    %28 = arith.cmpi eq, %arg1, %c0_i32_18 : i32
    %29 = arith.extui %28 : i1 to i32
    %c0_i32_19 = arith.constant 0 : i32
    %30 = arith.cmpi ne, %29, %c0_i32_19 : i32
    scf.if %30 {
      %c0_20 = arith.constant 0 : index
      %c0_21 = arith.constant 0 : index
      %31 = vector.load %arg7[%c0_20, %c0_21] : memref<16x32xf32, #tpu.memory_space<vmem>>, vector<16x32xf32>
      %32 = arith.truncf %31 : vector<16x32xf32> to vector<16x32xbf16>
      %c0_22 = arith.constant 0 : index
      %c0_23 = arith.constant 0 : index
      %33 = vector.load %arg6[%c0_22, %c0_23] : memref<16x32xbf16, #tpu.memory_space<vmem>>, vector<16x32xbf16>
      tpu.vector_store %arg6[%c0_22, %c0_23], %32 {strides = array<i32>} : memref<16x32xbf16, #tpu.memory_space<vmem>>, vector<16x32xbf16>,
    } else {
    }
    return
  }
  func.func @transform_0(%arg0: i32, %arg1: i32) -> (i32, i32) {
    %c0_i32 = arith.constant 0 : i32
    %c0_i32_0 = arith.constant 0 : i32
    return %arg0, %c0_i32 : i32, i32
  }
  func.func @transform_1(%arg0: i32, %arg1: i32) -> (i32, i32) {
    %c0_i32 = arith.constant 0 : i32
    %c0_i32_0 = arith.constant 0 : i32
    return %c0_i32, %arg1 : i32, i32
  }
  func.func @transform_2(%arg0: i32, %arg1: i32) -> (i32, i32) {
    %c0_i32 = arith.constant 0 : i32
    %c0_i32_0 = arith.constant 0 : i32
    return %c0_i32, %arg1 : i32, i32
  }
  func.func @transform_3(%arg0: i32, %arg1: i32) -> (i32, i32) {
    %c0_i32 = arith.constant 0 : i32
    %c0_i32_0 = arith.constant 0 : i32
    return %arg1, %c0_i32 : i32, i32
  }
  func.func @transform_4(%arg0: i32, %arg1: i32) -> (i32, i32) {
    %c0_i32 = arith.constant 0 : i32
    %c0_i32_0 = arith.constant 0 : i32
    return %arg0, %c0_i32 : i32, i32
  }
}

</mosaic_0001>

<llo_original>
// kernel: tpu_custom_call.1
$region0: #{tpu_custom_call.1}
  #allocation0 [shape = 'u32[]', space=smem, size = 0x4, offset = 0x4, fixed_abs, tag = 'smem constant byte address 0x4 - core index']
  #allocation1 [shape = 'u32[144,128]{1,0:T(1,128)}', space=vmem, size = 0x12000, scoped, tag = 'internal scratch']
  #allocation2 [shape = 'f32[16,32]{1,0:T(8,128)}', space=vmem, size = 0x2000, scoped, tag = 'scratch operand']
  %s0 = inlined_call_operand.vmem [shape: bf16[16,32], index: 0, kind: input, shape index: {}]
  %s1 = inlined_call_operand.vmem [shape: bf16[32,64], index: 1, kind: input, shape index: {}]
  %s2 = inlined_call_operand.vmem [shape: bf16[32,64], index: 2, kind: input, shape index: {}]
  %s3 = inlined_call_operand.vmem [shape: bf16[64,32], index: 3, kind: input, shape index: {}]
  %s4 = inlined_call_operand.hbm [shape: bf16[16,32], index: 4, kind: output, shape index: {}]
  %s5 = sld [smem:[#allocation0]]
  $region34: #{tpu_custom_call.1} parent=0
    _
  %s7 = ssub.s32 1, %s5
  %s8 = scalar_select 0, %s7, %s5
  $region1: #{tpu_custom_call.1} parent=0
    #allocation3 [shape = 'u8[4096]{0}', space=vmem, size = 0x1000, scoped, tag = 'output window, operand 0, single buffered']
    #allocation4 [shape = 's32[1]{0}', space=sflag, size = 0x4, scoped, tag = 'scoped memory for tpu_custom_call.1']
    %9 = vsyncpa [#allocation4], 0
    // Predicated region
    $region2: #{tpu_custom_call.1} parent=1 // pred_check
      _
    $region3: #{tpu_custom_call.1} parent=1 // pred_check_branch
      %11 = sbr.rel (0) target = $region5
    $region4: #{tpu_custom_call.1} parent=1 // pred_region
      _
    $region5: #{tpu_custom_call.1} parent=1 // pred_fallthru
      _
    // Predicated region
    $region6: #{tpu_custom_call.1} parent=1 // pred_check
      _
    $region7: #{tpu_custom_call.1} parent=1 // pred_check_branch
      %13 = sbr.rel (0) target = $region9
    $region8: #{tpu_custom_call.1} parent=1 // pred_region
      _
    $region9: #{tpu_custom_call.1} parent=1 // pred_fallthru
      _
    // Predicated region
    $region10: #{tpu_custom_call.1} parent=1 // pred_check
      _
    $region11: #{tpu_custom_call.1} parent=1 // pred_check_branch
      %15 = sbr.rel (0) target = $region13
    $region12: #{tpu_custom_call.1} parent=1 // pred_region
      _
    $region13: #{tpu_custom_call.1} parent=1 // pred_fallthru
      _
    // Predicated region
    $region14: #{tpu_custom_call.1} parent=1 // pred_check
      _
    $region15: #{tpu_custom_call.1} parent=1 // pred_check_branch
      %17 = sbr.rel (0) target = $region17
    $region16: #{tpu_custom_call.1} parent=1 // pred_region
      _
    $region17: #{tpu_custom_call.1} parent=1 // pred_fallthru
      _
    %p19 = scmp.eq.s32.totalorder 0, 0
    // Predicated region
    $region18: #{tpu_custom_call.1} parent=1 // pred_check
      %p20 = pneg %p19
    $region19: #{tpu_custom_call.1} parent=1 // pred_check_branch
      %22 = sbr.rel (%p20) target = $region21
    $region20: #{tpu_custom_call.1} parent=1 // pred_region
      %vm23 = vcmask 261120
      %24 = vst.msk [vmem:[#allocation2] sm:$0xff] %vm23, 0.0
      %25 = vst.msk [vmem:[#allocation2 + $0x8] sm:$0xff] %vm23, 0.0
    $region21: #{tpu_custom_call.1} parent=1 // pred_fallthru
      _
    %v26 = vld [vmem:[%s0] sm:$0xf]
    %v27 = vld [vmem:[%s0 + $0x4] sm:$0xf]
    %v28 = vld [vmem:[%s1] sm:$0xf]
    %v29 = vld [vmem:[%s1 + $0x4] sm:$0xf]
    %v30 = vld [vmem:[%s1 + $0x8] sm:$0xf]
    %v31 = vld [vmem:[%s1 + $0xc] sm:$0xf]
    %v34 = vunpack.c.l.b16 %v26
    %v35 = vunpack.c.l.b16 %v27
    %v36 = vpack.c.b16 %v35, %v34
    %v41 = vunpack.c.l.b16 %v28
    %v42 = vunpack.c.l.b16 %v29
    %v43 = vunpack.c.l.b16 %v30
    %v44 = vunpack.c.l.b16 %v31
    %v45 = vpack.c.b16 %v42, %v41
    %v46 = vpack.c.b16 %v44, %v43
    %vm49 = vcmask 261120
    %v51 = vsel %vm49, %v36, 0
    %53 = vmatprep.subr.bf16.mxu0 0
    %54 = vmatpush1.bf16.msra.mxu0 %v45
    %55 = vmatprep.subr.bf16.mxu0 0
    %56 = vmatpush1.bf16.msra.mxu0 %v46
    %57 = vmatprep.subr.bf16.mxu0 0
    %58 = vmatpush1.bf16.msra.mxu0 0
    %59 = vmatprep.subr.bf16.mxu0 0
    %60 = vmatpush1.bf16.msra.mxu0 0
    %61 = vmatprep.subr.bf16.mxu0 0
    %62 = vmatpush1.bf16.msra.mxu0 0
    %63 = vmatprep.subr.bf16.mxu0 0
    %64 = vmatpush1.bf16.msra.mxu0 0
    %65 = vmatprep.subr.bf16.mxu0 0
    %66 = vmatpush1.bf16.msra.mxu0 0
    %67 = vmatprep.subr.bf16.mxu0 0
    %68 = vmatpush1.bf16.msra.mxu0 0
    %69 = vmatprep.subr.bf16.mxu0 0
    %70 = vmatpush1.bf16.msra.mxu0 0
    %71 = vmatprep.subr.bf16.mxu0 0
    %72 = vmatpush1.bf16.msra.mxu0 0
    %73 = vmatprep.subr.bf16.mxu0 0
    %74 = vmatpush1.bf16.msra.mxu0 0
    %75 = vmatprep.subr.bf16.mxu0 0
    %76 = vmatpush1.bf16.msra.mxu0 0
    %77 = vmatprep.subr.bf16.mxu0 0
    %78 = vmatpush1.bf16.msra.mxu0 0
    %79 = vmatprep.subr.bf16.mxu0 0
    %80 = vmatpush1.bf16.msra.mxu0 0
    %81 = vmatprep.subr.bf16.mxu0 0
    %82 = vmatpush1.bf16.msra.mxu0 0
    %83 = vmatprep.subr.bf16.mxu0 0
    %84 = vmatpush1.bf16.msra.mxu0 0
    %85 = vmatprep.mubr.bf16.mxu0 0
    %86 = vmatmul.mubr.bf16.gmra.mrb[0].mxu0 %v51
    %v87 = vpop.f32.mrb[0].mxu0
    %v88 = vadd.f32 0.0, %v87
    %v89 = vpop.f32.mrb[0].mxu0
    %v90 = vpop.f32.mrb[0].mxu0
    %v91 = vadd.f32 0.0, %v90
    %v92 = vpop.f32.mrb[0].mxu0
    %93 = vdwg.mxu0
    %v94 = vmul.f32 %v88, 0.5
    %v95 = vmul.f32 %v91, 0.5
    %v96 = vmul.f32 %v88, 0.044715
    %v97 = vmul.f32 %v91, 0.044715
    %v98 = vmul.f32 %v96, %v88
    %v99 = vmul.f32 %v97, %v91
    %v100 = vmul.f32 %v98, %v88
    %v101 = vmul.f32 %v99, %v91
    %v102 = vadd.f32 %v88, %v100
    %v103 = vadd.f32 %v91, %v101
    %v104 = vmul.f32 %v102, 0.7978846
    %v105 = vmul.f32 %v103, 0.7978846
    %v106 = vtanh.pop %v104
    %v107 = vtanh.pop %v105
    %v108 = vadd.f32 %v106, 1.0
    %v109 = vadd.f32 %v107, 1.0
    %v110 = vmul.f32 %v94, %v108
    %v111 = vmul.f32 %v95, %v109
    %v112 = vld [vmem:[%s2] sm:$0xf]
    %v113 = vld [vmem:[%s2 + $0x4] sm:$0xf]
    %v114 = vld [vmem:[%s2 + $0x8] sm:$0xf]
    %v115 = vld [vmem:[%s2 + $0xc] sm:$0xf]
    %v120 = vunpack.c.l.b16 %v112
    %v121 = vunpack.c.l.b16 %v113
    %v122 = vunpack.c.l.b16 %v114
    %v123 = vunpack.c.l.b16 %v115
    %v124 = vpack.c.b16 %v121, %v120
    %v125 = vpack.c.b16 %v123, %v122
    %128 = vmatprep.subr.bf16.mxu0 0
    %129 = vmatpush1.bf16.msra.mxu0 %v124
    %130 = vmatprep.subr.bf16.mxu0 0
    %131 = vmatpush1.bf16.msra.mxu0 %v125
    %132 = vmatprep.subr.bf16.mxu0 0
    %133 = vmatpush1.bf16.msra.mxu0 0
    %134 = vmatprep.subr.bf16.mxu0 0
    %135 = vmatpush1.bf16.msra.mxu0 0
    %136 = vmatprep.subr.bf16.mxu0 0
    %137 = vmatpush1.bf16.msra.mxu0 0
    %138 = vmatprep.subr.bf16.mxu0 0
    %139 = vmatpush1.bf16.msra.mxu0 0
    %140 = vmatprep.subr.bf16.mxu0 0
    %141 = vmatpush1.bf16.msra.mxu0 0
    %142 = vmatprep.subr.bf16.mxu0 0
    %143 = vmatpush1.bf16.msra.mxu0 0
    %144 = vmatprep.subr.bf16.mxu0 0
    %145 = vmatpush1.bf16.msra.mxu0 0
    %146 = vmatprep.subr.bf16.mxu0 0
    %147 = vmatpush1.bf16.msra.mxu0 0
    %148 = vmatprep.subr.bf16.mxu0 0
    %149 = vmatpush1.bf16.msra.mxu0 0
    %150 = vmatprep.subr.bf16.mxu0 0
    %151 = vmatpush1.bf16.msra.mxu0 0
    %152 = vmatprep.subr.bf16.mxu0 0
    %153 = vmatpush1.bf16.msra.mxu0 0
    %154 = vmatprep.subr.bf16.mxu0 0
    %155 = vmatpush1.bf16.msra.mxu0 0
    %156 = vmatprep.subr.bf16.mxu0 0
    %157 = vmatpush1.bf16.msra.mxu0 0
    %158 = vmatprep.subr.bf16.mxu0 0
    %159 = vmatpush1.bf16.msra.mxu0 0
    %160 = vmatprep.mubr.bf16.mxu0 0
    %161 = vmatmul.mubr.bf16.gmra.mrb[0].mxu0 %v51
    %v162 = vpop.f32.mrb[0].mxu0
    %v163 = vadd.f32 0.0, %v162
    %v164 = vpop.f32.mrb[0].mxu0
    %v165 = vpop.f32.mrb[0].mxu0
    %v166 = vadd.f32 0.0, %v165
    %v167 = vpop.f32.mrb[0].mxu0
    %168 = vdwg.mxu0
    %v169 = vmul.f32 %v110, %v163
    %v170 = vmul.f32 %v111, %v166
    %v171 = vld [vmem:[#allocation2] sm:$0xff]
    %v172 = vld [vmem:[#allocation2 + $0x8] sm:$0xff]
    %v173 = vpack.c.bf16 %v170, %v169
    %v174 = vld [vmem:[%s3] sm:$0xf]
    %v175 = vld [vmem:[%s3 + $0x4] sm:$0xf]
    %v176 = vld [vmem:[%s3 + $0x8] sm:$0xf]
    %v177 = vld [vmem:[%s3 + $0xc] sm:$0xf]
    %v178 = vld [vmem:[%s3 + $0x10] sm:$0xf]
    %v179 = vld [vmem:[%s3 + $0x14] sm:$0xf]
    %v180 = vld [vmem:[%s3 + $0x18] sm:$0xf]
    %v181 = vld [vmem:[%s3 + $0x1c] sm:$0xf]
    %v190 = vunpack.c.l.b16 %v174
    %v191 = vunpack.c.l.b16 %v175
    %v192 = vunpack.c.l.b16 %v176
    %v193 = vunpack.c.l.b16 %v177
    %v194 = vunpack.c.l.b16 %v178
    %v195 = vunpack.c.l.b16 %v179
    %v196 = vunpack.c.l.b16 %v180
    %v197 = vunpack.c.l.b16 %v181
    %v198 = vpack.c.b16 %v191, %v190
    %v199 = vpack.c.b16 %v193, %v192
    %v200 = vpack.c.b16 %v195, %v194
    %v201 = vpack.c.b16 %v197, %v196
    %vm206 = vcmask 523264
    %v208 = vsel %vm206, %v173, 0
    %210 = vmatprep.subr.bf16.mxu0 0
    %211 = vmatpush1.bf16.msra.mxu0 %v198
    %212 = vmatprep.subr.bf16.mxu0 0
    %213 = vmatpush1.bf16.msra.mxu0 %v199
    %214 = vmatprep.subr.bf16.mxu0 0
    %215 = vmatpush1.bf16.msra.mxu0 %v200
    %216 = vmatprep.subr.bf16.mxu0 0
    %217 = vmatpush1.bf16.msra.mxu0 %v201
    %218 = vmatprep.subr.bf16.mxu0 0
    %219 = vmatpush1.bf16.msra.mxu0 0
    %220 = vmatprep.subr.bf16.mxu0 0
    %221 = vmatpush1.bf16.msra.mxu0 0
    %222 = vmatprep.subr.bf16.mxu0 0
    %223 = vmatpush1.bf16.msra.mxu0 0
    %224 = vmatprep.subr.bf16.mxu0 0
    %225 = vmatpush1.bf16.msra.mxu0 0
    %226 = vmatprep.subr.bf16.mxu0 0
    %227 = vmatpush1.bf16.msra.mxu0 0
    %228 = vmatprep.subr.bf16.mxu0 0
    %229 = vmatpush1.bf16.msra.mxu0 0
    %230 = vmatprep.subr.bf16.mxu0 0
    %231 = vmatpush1.bf16.msra.mxu0 0
    %232 = vmatprep.subr.bf16.mxu0 0
    %233 = vmatpush1.bf16.msra.mxu0 0
    %234 = vmatprep.subr.bf16.mxu0 0
    %235 = vmatpush1.bf16.msra.mxu0 0
    %236 = vmatprep.subr.bf16.mxu0 0
    %237 = vmatpush1.bf16.msra.mxu0 0
    %238 = vmatprep.subr.bf16.mxu0 0
    %239 = vmatpush1.bf16.msra.mxu0 0
    %240 = vmatprep.subr.bf16.mxu0 0
    %241 = vmatpush1.bf16.msra.mxu0 0
    %242 = vmatprep.mubr.bf16.mxu0 0
    %243 = vmatmul.mubr.bf16.gmra.mrb[0].mxu0 %v208
    %v244 = vpop.f32.mrb[0].mxu0
    %v245 = vadd.f32 0.0, %v244
    %v246 = vpop.f32.mrb[0].mxu0
    %v247 = vpop.f32.mrb[0].mxu0
    %v248 = vadd.f32 0.0, %v247
    %v249 = vpop.f32.mrb[0].mxu0
    %250 = vdwg.mxu0
    %v251 = vadd.f32 %v171, %v245
    %v252 = vadd.f32 %v172, %v248
    %253 = vst.msk [vmem:[#allocation2] sm:$0xff] %vm49, %v251
    %254 = vst.msk [vmem:[#allocation2 + $0x8] sm:$0xff] %vm49, %v252
    // Predicated region
    $region22: #{tpu_custom_call.1} parent=1 // pred_check
      %p255 = pneg %p19
    $region23: #{tpu_custom_call.1} parent=1 // pred_check_branch
      %257 = sbr.rel (%p255) target = $region25
    $region24: #{tpu_custom_call.1} parent=1 // pred_region
      %v258 = vld [vmem:[#allocation2] sm:$0xff]
      %v259 = vld [vmem:[#allocation2 + $0x8] sm:$0xff]
      %v260 = vpack.c.bf16 %v259, %v258
      %v262 = vunpack.c.l.b16 %v260
      %v263 = vunpack.c.h.b16 %v260
      %v264 = vpack.c.b16 %v262, %v262
      %v265 = vpack.c.b16 %v263, %v263
      %vm268 = vcmask 257024
      %269 = vst.msk [vmem:[#allocation3] sm:$0xf] %vm268, %v264
      %270 = vst.msk [vmem:[#allocation3 + $0x4] sm:$0xf] %vm268, %v265
    $region25: #{tpu_custom_call.1} parent=1 // pred_fallthru
      _
    // Predicated region
    $region26: #{tpu_custom_call.1} parent=1 // pred_check
      _
    $region27: #{tpu_custom_call.1} parent=1 // pred_check_branch
      %272 = sbr.rel (0) target = $region29
    $region28: #{tpu_custom_call.1} parent=1 // pred_region
      %s274 = ssub.s32 128, 128
      %275 = vsyncadd [#allocation4], %s274
      %s276 = sshll.u32 [#allocation3], 4
      %s277 = int_to_ptr.vmem [resolvable:$true] %s276
      %282 = dma.vmem_to_hbm [thread:$0]  %s277, 128, %s4, [#allocation4], 64, 64, 4
    $region29: #{tpu_custom_call.1} parent=1 // pred_fallthru
      _
    // Predicated region
    $region30: #{tpu_custom_call.1} parent=1 // pred_check
      _
    $region31: #{tpu_custom_call.1} parent=1 // pred_check_branch
      %284 = sbr.rel (0) target = $region33
    $region32: #{tpu_custom_call.1} parent=1 // pred_region
      %285 = dma.done [#allocation4], 128
    $region33: #{tpu_custom_call.1} parent=1 // pred_fallthru
      _
    %286 = vsyncpa [#allocation4], 1

</llo_original>
